<compile_context>
chip_gen: v7x
topology: tpu7x:2x2x1
jax: 0.10.0
libtpu: 0.0.40
codegen_flags: <defaults>
</compile_context>

<pallas_src>
import jax
import jax.numpy as jnp
from jax import lax
from jax.experimental import pallas as pl
from jax.experimental.pallas import tpu as pltpu

BIO_DIM = 128
QUANTUM_DIM = 64
HIDDEN_DIM = 256
BATCH = 8
SPIKE_THRESHOLD = 0.5


def unified_quantum_bridge_kernel(
    # inputs
    bio_ref, w1_ref, b1_ref, w2_ref, b2_ref, wc_ref, s2_ref, thr_ref,
    # outputs
    qc_ref, dens_ref, misc_ref,
):
    f32 = jnp.float32
    bf16 = jnp.bfloat16
    Q = QUANTUM_DIM

    # --- bridge encoder: bio -> hidden -> (amp | phase | u_logit) -------------
    bio = bio_ref[...].astype(bf16)                                   # (B, 128)
    h = jnp.tanh(jnp.dot(bio, w1_ref[...], preferred_element_type=f32)
                 + b1_ref[...])                                       # (B, 256) f32
    z = (jnp.dot(h.astype(bf16), w2_ref[...], preferred_element_type=f32)
         + b2_ref[...])                                               # (B, 256) f32
    amp = z[:, :Q]                                                    # (B, 64)
    phase = z[:, Q:2 * Q]                                             # (B, 64)
    u_logit = z[:, 2 * Q:2 * Q + 1]                                   # (B, 1)

    qr = amp * jnp.cos(phase)                                         # Re(q)
    qi = amp * jnp.sin(phase)                                         # Im(q)

    # uncertainty = mean(sigmoid(u_logit)); stable sigmoid via tanh (EUP).
    uncertainty = jnp.mean(0.5 * (jnp.tanh(0.5 * u_logit) + 1.0))

    # --- spikes: |quantum_state| > adaptive_threshold -------------------------
    # |amp * e^{i*phase}| == |amp|  (exact; saves the sqrt of qr^2 + qi^2)
    mag = jnp.abs(amp)
    spikes = (mag > thr_ref[...]).astype(f32)
    spk_mean = jnp.mean(spikes)
    new_thr = 0.99 * thr_ref[...] + 0.01 * spk_mean                   # (1, 64)

    head = jnp.concatenate(
        [jnp.reshape(uncertainty, (1, 1)),
         jnp.reshape(spk_mean, (1, 1)),
         jnp.zeros((1, Q - 2), f32)], axis=-1)                        # (1, 64)
    misc_ref[...] = jnp.concatenate([head, new_thr], axis=-1)         # (1, 128)

    # --- quantum coupling: one packed complex matmul  [qr|qi] @ Wc ------------
    qcat = jnp.concatenate([qr, qi], axis=-1).astype(bf16)            # (B, 128)
    wc = wc_ref[...]                                                  # (128, 128) bf16
    qc_ref[...] = jnp.dot(qcat, wc, preferred_element_type=f32)       # (B, 128) = [qr'|qi']

    # --- density matrix N @ N^H directly from the packed coupling weight ------
    # Wc[:Q,:] @ Wc^T = [Wr Wr^T + Wi Wi^T | Wi Wr^T - Wr Wi^T] = [dr | di]
    # normalisation 1/(max|W| + eps)^2 folded into an output scale.
    s2 = s2_ref[...]                                                  # (64, 128) f32 = [wr | wi]
    ssq = s2 * s2
    # (ssq + roll(ssq, 64)) holds wr^2 + wi^2 in every lane (duplicated) -> no lane slicing
    m2 = jnp.max(ssq + pltpu.roll(ssq, Q, 1))                         # max |W|^2 (f32)
    mmax = jnp.sqrt(m2)
    inv2 = 1.0 / ((mmax + 1e-8) * (mmax + 1e-8))                      # output scale

    dn = (((1,), (1,)), ((), ()))                                     # X @ Y^T
    dens = lax.dot_general(wc[:Q, :], wc, dn,
                           preferred_element_type=f32)                # (64, 128) = [dr | di]
    dens_ref[...] = dens * inv2


def _quantum_entangle(dr, di):
    """Entanglement measure from the 64x64 Hermitian density matrix."""
    density = (dr + 1j * di).astype(jnp.complex64)
    evals = jnp.linalg.eigvalsh(density)                              # real, ascending
    valid = evals > 1e-7
    entropy = -jnp.sum(jnp.where(valid, evals * jnp.log2(evals + 1e-7), 0.0))
    count = jnp.sum(valid).astype(jnp.float32)
    max_entropy = jnp.log2(jnp.maximum(count, 2.0))
    ent = 1.0 - entropy / max_entropy
    return jnp.clip(jnp.where(count > 0, ent, 0.0), 0.0, 1.0)


def pack_params(params):
    """Host-side packing: fused weights, bf16 matmul operands."""
    bf16 = jnp.bfloat16
    f32 = jnp.float32
    H, Q = HIDDEN_DIM, QUANTUM_DIM
    w2 = jnp.concatenate(
        [params["w2a"], params["w2p"], params["wu"],
         jnp.zeros((H, 2 * Q - 1), f32)], axis=1)                     # (256, 256)
    b2 = jnp.concatenate(
        [params["b2a"], params["b2p"], params["bu"],
         jnp.zeros((1, 2 * Q - 1), f32)], axis=1)                     # (1, 256)
    wr, wi = params["wr"], params["wi"]
    wc = jnp.concatenate(
        [jnp.concatenate([wr, wi], axis=1),
         jnp.concatenate([-wi, wr], axis=1)], axis=0)                 # (128, 128)
    s2 = jnp.concatenate([wr, wi], axis=1)                            # (64, 128) f32, lane-dense
    return {
        "w1": params["w1"].astype(bf16),
        "b1": params["b1"].astype(f32),
        "w2": w2.astype(bf16),
        "b2": b2.astype(f32),
        "wc": wc.astype(bf16),
        "s2": s2.astype(f32),
        "thr": params["thr"].astype(f32),
    }


def unified_quantum_bridge(bio_state, packed):
    """Returns (quantum_state[complex64], coherence, aux dict)."""
    B = bio_state.shape[0]
    Q = QUANTUM_DIM
    out_shapes = (
        jax.ShapeDtypeStruct((B, 2 * Q), jnp.float32),        # [qr' | qi']
        jax.ShapeDtypeStruct((Q, 2 * Q), jnp.float32),        # [dr  | di ]
        jax.ShapeDtypeStruct((1, 2 * Q), jnp.float32),        # [unc, spk, pad, new_thr]
    )
    vmem = pltpu.MemorySpace.VMEM
    qc, dens, misc = pl.pallas_call(
        unified_quantum_bridge_kernel,
        out_shape=out_shapes,
        in_specs=[pl.BlockSpec(memory_space=vmem) for _ in range(8)],
        out_specs=tuple(pl.BlockSpec(memory_space=vmem) for _ in range(3)),
    )(bio_state, packed["w1"], packed["b1"], packed["w2"], packed["b2"],
      packed["wc"], packed["s2"], packed["thr"])

    quantum_state = (qc[:, :Q] + 1j * qc[:, Q:]).astype(jnp.complex64)
    coherence = 1.0 - misc[0, 0]
    entanglement = _quantum_entangle(dens[:, :Q], dens[:, Q:])
    aux = {
        "spike_rate": misc[0, 1],
        "adaptive_threshold": misc[0, Q:],
        "entanglement": entanglement,
    }
    return quantum_state, coherence, aux


def init_params(key):
    ks = jax.random.split(key, 6)
    return {
        # BalancedBioEntropicBridge (synthetic): bio -> hidden -> (amp, phase) + uncertainty
        "w1":  jax.random.normal(ks[0], (BIO_DIM, HIDDEN_DIM), jnp.float32) / jnp.sqrt(float(BIO_DIM)),
        "b1":  jnp.zeros((1, HIDDEN_DIM), jnp.float32),
        "w2a": jax.random.normal(ks[1], (HIDDEN_DIM, QUANTUM_DIM), jnp.float32) / jnp.sqrt(float(HIDDEN_DIM)),
        "w2p": jax.random.normal(ks[2], (HIDDEN_DIM, QUANTUM_DIM), jnp.float32) / jnp.sqrt(float(HIDDEN_DIM)),
        "b2a": jnp.zeros((1, QUANTUM_DIM), jnp.float32),
        "b2p": jnp.zeros((1, QUANTUM_DIM), jnp.float32),
        "wu":  jax.random.normal(ks[3], (HIDDEN_DIM, 1), jnp.float32) / jnp.sqrt(float(HIDDEN_DIM)),
        "bu":  jnp.zeros((1, 1), jnp.float32),
        # complex_weights = complex(randn*0.5, randn*0.5), 64x64
        "wr":  jax.random.normal(ks[4], (QUANTUM_DIM, QUANTUM_DIM), jnp.float32) * 0.5,
        "wi":  jax.random.normal(ks[5], (QUANTUM_DIM, QUANTUM_DIM), jnp.float32) * 0.5,
        # adaptive_threshold = ones(quantum_dim) * spike_threshold
        "thr": jnp.full((1, QUANTUM_DIM), SPIKE_THRESHOLD, jnp.float32),
    }


if __name__ == "__main__":
    key = jax.random.PRNGKey(0)
    k_bio, k_par = jax.random.split(key)
    bio_state = jax.random.normal(k_bio, (BATCH, BIO_DIM), jnp.float32)
    params = init_params(k_par)
    packed = pack_params(params)

    quantum_state, coherence, aux = unified_quantum_bridge(bio_state, packed)
    jax.block_until_ready((quantum_state, coherence, aux))

    assert quantum_state.shape == (BATCH, QUANTUM_DIM)
    assert quantum_state.dtype == jnp.complex64
    assert aux["adaptive_threshold"].shape == (QUANTUM_DIM,)
    print("KERNEL_OK")
</pallas_src>

<mosaic_0001>
module attributes {stable_mosaic.version = 11 : i64} {
  func.func @unified_quantum_bridge_kernel(%arg0: memref<8x128xf32, #tpu.memory_space<vmem>>, %arg1: memref<128x256xbf16, #tpu.memory_space<vmem>>, %arg2: memref<1x256xf32, #tpu.memory_space<vmem>>, %arg3: memref<256x256xbf16, #tpu.memory_space<vmem>>, %arg4: memref<1x256xf32, #tpu.memory_space<vmem>>, %arg5: memref<128x128xbf16, #tpu.memory_space<vmem>>, %arg6: memref<64x128xf32, #tpu.memory_space<vmem>>, %arg7: memref<1x64xf32, #tpu.memory_space<vmem>>, %arg8: memref<8x128xf32, #tpu.memory_space<vmem>>, %arg9: memref<64x128xf32, #tpu.memory_space<vmem>>, %arg10: memref<1x128xf32, #tpu.memory_space<vmem>>) attributes {dimension_semantics = [], scalar_prefetch = 0 : i64, scratch_operands = 0 : i64, tpu.core_type = #tpu.core_type<tc>} {
    %c0 = arith.constant 0 : index
    %c0_0 = arith.constant 0 : index
    %0 = vector.load %arg0[%c0, %c0_0] : memref<8x128xf32, #tpu.memory_space<vmem>>, vector<8x128xf32>
    %1 = arith.truncf %0 : vector<8x128xf32> to vector<8x128xbf16>
    %c0_1 = arith.constant 0 : index
    %c0_2 = arith.constant 0 : index
    %2 = vector.load %arg1[%c0_1, %c0_2] : memref<128x256xbf16, #tpu.memory_space<vmem>>, vector<128x256xbf16>
    %cst = arith.constant dense<0.000000e+00> : vector<8x256xf32>
    %3 = tpu.matmul %1, %2, %cst {dimension_numbers = #tpu.dot_dimension_numbers<[1], [0], [0], [1], [0, 0, 1, 1], [], []>} : vector<8x128xbf16>, vector<128x256xbf16>, vector<8x256xf32> -> vector<8x256xf32>
    %c0_3 = arith.constant 0 : index
    %c0_4 = arith.constant 0 : index
    %4 = vector.load %arg2[%c0_3, %c0_4] : memref<1x256xf32, #tpu.memory_space<vmem>>, vector<1x256xf32>
    %5 = vector.broadcast %4 : vector<1x256xf32> to vector<8x256xf32>
    %6 = arith.addf %3, %5 : vector<8x256xf32>
    %7 = math.tanh %6 : vector<8x256xf32>
    %8 = arith.truncf %7 : vector<8x256xf32> to vector<8x256xbf16>
    %c0_5 = arith.constant 0 : index
    %c0_6 = arith.constant 0 : index
    %9 = vector.load %arg3[%c0_5, %c0_6] : memref<256x256xbf16, #tpu.memory_space<vmem>>, vector<256x256xbf16>
    %cst_7 = arith.constant dense<0.000000e+00> : vector<8x256xf32>
    %10 = tpu.matmul %8, %9, %cst_7 {dimension_numbers = #tpu.dot_dimension_numbers<[1], [0], [0], [1], [0, 0, 1, 1], [], []>} : vector<8x256xbf16>, vector<256x256xbf16>, vector<8x256xf32> -> vector<8x256xf32>
    %c0_8 = arith.constant 0 : index
    %c0_9 = arith.constant 0 : index
    %11 = vector.load %arg4[%c0_8, %c0_9] : memref<1x256xf32, #tpu.memory_space<vmem>>, vector<1x256xf32>
    %12 = vector.broadcast %11 : vector<1x256xf32> to vector<8x256xf32>
    %13 = arith.addf %10, %12 : vector<8x256xf32>
    %14 = vector.extract_strided_slice %13 {offsets = [0, 0], sizes = [8, 64], strides = [1, 1]} : vector<8x256xf32> to vector<8x64xf32>
    %15 = vector.extract_strided_slice %13 {offsets = [0, 64], sizes = [8, 64], strides = [1, 1]} : vector<8x256xf32> to vector<8x64xf32>
    %16 = vector.extract_strided_slice %13 {offsets = [0, 128], sizes = [8, 1], strides = [1, 1]} : vector<8x256xf32> to vector<8x1xf32>
    %17 = math.cos %15 : vector<8x64xf32>
    %18 = arith.mulf %14, %17 : vector<8x64xf32>
    %19 = math.sin %15 : vector<8x64xf32>
    %20 = arith.mulf %14, %19 : vector<8x64xf32>
    %cst_10 = arith.constant 5.000000e-01 : f32
    %21 = vector.broadcast %cst_10 : f32 to vector<8x1xf32>
    %22 = arith.mulf %21, %16 : vector<8x1xf32>
    %23 = math.tanh %22 : vector<8x1xf32>
    %cst_11 = arith.constant 1.000000e+00 : f32
    %24 = vector.broadcast %cst_11 : f32 to vector<8x1xf32>
    %25 = arith.addf %23, %24 : vector<8x1xf32>
    %cst_12 = arith.constant 5.000000e-01 : f32
    %26 = vector.broadcast %cst_12 : f32 to vector<8x1xf32>
    %27 = arith.mulf %26, %25 : vector<8x1xf32>
    %28 = vector.shape_cast %27 : vector<8x1xf32> to vector<1x8x1xf32>
    %cst_13 = arith.constant dense<0.000000e+00> : vector<1xf32>
    %29 = vector.multi_reduction <add>, %28, %cst_13 [1, 2] : vector<1x8x1xf32> to vector<1xf32>
    %30 = vector.shape_cast %29 : vector<1xf32> to vector<1x1x1xf32>
    %31 = vector.extract %30[0, 0, 0] : f32 from vector<1x1x1xf32>
    %cst_14 = arith.constant 8.000000e+00 : f32
    %32 = arith.divf %31, %cst_14 : f32
    %33 = math.absf %14 : vector<8x64xf32>
    %c0_15 = arith.constant 0 : index
    %c0_16 = arith.constant 0 : index
    %34 = vector.load %arg7[%c0_15, %c0_16] : memref<1x64xf32, #tpu.memory_space<vmem>>, vector<1x64xf32>
    %35 = vector.broadcast %34 : vector<1x64xf32> to vector<8x64xf32>
    %36 = arith.cmpf ogt, %33, %35 : vector<8x64xf32>
    %37 = arith.extui %36 : vector<8x64xi1> to vector<8x64xi32>
    %38 = arith.sitofp %37 : vector<8x64xi32> to vector<8x64xf32>
    %39 = vector.shape_cast %38 : vector<8x64xf32> to vector<1x8x64xf32>
    %cst_17 = arith.constant dense<0.000000e+00> : vector<1xf32>
    %40 = vector.multi_reduction <add>, %39, %cst_17 [1, 2] : vector<1x8x64xf32> to vector<1xf32>
    %41 = vector.shape_cast %40 : vector<1xf32> to vector<1x1x1xf32>
    %42 = vector.extract %41[0, 0, 0] : f32 from vector<1x1x1xf32>
    %cst_18 = arith.constant 5.120000e+02 : f32
    %43 = arith.divf %42, %cst_18 : f32
    %c0_19 = arith.constant 0 : index
    %c0_20 = arith.constant 0 : index
    %44 = vector.load %arg7[%c0_19, %c0_20] : memref<1x64xf32, #tpu.memory_space<vmem>>, vector<1x64xf32>
    %cst_21 = arith.constant 9.900000e-01 : f32
    %45 = vector.broadcast %cst_21 : f32 to vector<1x64xf32>
    %46 = arith.mulf %45, %44 : vector<1x64xf32>
    %cst_22 = arith.constant 0.00999999977 : f32
    %47 = arith.mulf %cst_22, %43 : f32
    %48 = vector.broadcast %47 : f32 to vector<1x64xf32>
    %49 = arith.addf %46, %48 : vector<1x64xf32>
    %50 = vector.broadcast %32 : f32 to vector<1x1xf32>
    %51 = vector.broadcast %43 : f32 to vector<1x1xf32>
    %cst_23 = arith.constant 0.000000e+00 : f32
    %52 = vector.broadcast %cst_23 : f32 to vector<1x62xf32>
    %53 = tpu.concatenate %50, %51, %52 in 1 : vector<1x1xf32>, vector<1x1xf32>, vector<1x62xf32> -> vector<1x64xf32>
    %54 = tpu.concatenate %53, %49 in 1 : vector<1x64xf32>, vector<1x64xf32> -> vector<1x128xf32>
    %c0_24 = arith.constant 0 : index
    %c0_25 = arith.constant 0 : index
    %55 = vector.load %arg10[%c0_24, %c0_25] : memref<1x128xf32, #tpu.memory_space<vmem>>, vector<1x128xf32>
    tpu.vector_store %arg10[%c0_24, %c0_25], %54 {strides = array<i32>} : memref<1x128xf32, #tpu.memory_space<vmem>>, vector<1x128xf32>,
    %56 = tpu.concatenate %18, %20 in 1 : vector<8x64xf32>, vector<8x64xf32> -> vector<8x128xf32>
    %57 = arith.truncf %56 : vector<8x128xf32> to vector<8x128xbf16>
    %c0_26 = arith.constant 0 : index
    %c0_27 = arith.constant 0 : index
    %58 = vector.load %arg5[%c0_26, %c0_27] : memref<128x128xbf16, #tpu.memory_space<vmem>>, vector<128x128xbf16>
    %cst_28 = arith.constant dense<0.000000e+00> : vector<8x128xf32>
    %59 = tpu.matmul %57, %58, %cst_28 {dimension_numbers = #tpu.dot_dimension_numbers<[1], [0], [0], [1], [0, 0, 1, 1], [], []>} : vector<8x128xbf16>, vector<128x128xbf16>, vector<8x128xf32> -> vector<8x128xf32>
    %c0_29 = arith.constant 0 : index
    %c0_30 = arith.constant 0 : index
    %60 = vector.load %arg8[%c0_29, %c0_30] : memref<8x128xf32, #tpu.memory_space<vmem>>, vector<8x128xf32>
    tpu.vector_store %arg8[%c0_29, %c0_30], %59 {strides = array<i32>} : memref<8x128xf32, #tpu.memory_space<vmem>>, vector<8x128xf32>,
    %c0_31 = arith.constant 0 : index
    %c0_32 = arith.constant 0 : index
    %61 = vector.load %arg6[%c0_31, %c0_32] : memref<64x128xf32, #tpu.memory_space<vmem>>, vector<64x128xf32>
    %62 = arith.mulf %61, %61 : vector<64x128xf32>
    %c64_i32 = arith.constant 64 : i32
    %63 = tpu.dynamic_rotate %62 by %c64_i32 dim 1 : vector<64x128xf32>, i32 -> vector<64x128xf32>
    %64 = arith.addf %62, %63 : vector<64x128xf32>
    %65 = vector.shape_cast %64 : vector<64x128xf32> to vector<1x64x128xf32>
    %cst_33 = arith.constant dense<0xFF800000> : vector<1xf32>
    %66 = vector.multi_reduction <maximumf>, %65, %cst_33 [1, 2] : vector<1x64x128xf32> to vector<1xf32>
    %67 = vector.shape_cast %66 : vector<1xf32> to vector<1x1x1xf32>
    %68 = vector.extract %67[0, 0, 0] : f32 from vector<1x1x1xf32>
    %69 = math.sqrt %68 : f32
    %cst_34 = arith.constant 9.99999993E-9 : f32
    %70 = arith.addf %69, %cst_34 : f32
    %cst_35 = arith.constant 9.99999993E-9 : f32
    %71 = arith.addf %69, %cst_35 : f32
    %72 = arith.mulf %70, %71 : f32
    %cst_36 = arith.constant 1.000000e+00 : f32
    %73 = arith.divf %cst_36, %72 : f32
    %74 = vector.extract_strided_slice %58 {offsets = [0, 0], sizes = [64, 128], strides = [1, 1]} : vector<128x128xbf16> to vector<64x128xbf16>
    %cst_37 = arith.constant dense<0.000000e+00> : vector<64x128xf32>
    %75 = tpu.matmul %74, %58, %cst_37 {dimension_numbers = #tpu.dot_dimension_numbers<[1], [1], [0], [0], [0, 0, 1, 0], [], []>} : vector<64x128xbf16>, vector<128x128xbf16>, vector<64x128xf32> -> vector<64x128xf32>
    %76 = vector.broadcast %73 : f32 to vector<64x128xf32>
    %77 = arith.mulf %75, %76 : vector<64x128xf32>
    %c0_38 = arith.constant 0 : index
    %c0_39 = arith.constant 0 : index
    %78 = vector.load %arg9[%c0_38, %c0_39] : memref<64x128xf32, #tpu.memory_space<vmem>>, vector<64x128xf32>
    tpu.vector_store %arg9[%c0_38, %c0_39], %77 {strides = array<i32>} : memref<64x128xf32, #tpu.memory_space<vmem>>, vector<64x128xf32>,
    return
  }
}

</mosaic_0001>

<llo_original>
// kernel: tpu_custom_call.1
$region0: #{tpu_custom_call.1}
  #allocation0 [shape = 'u32[]', space=smem, size = 0x4, offset = 0x4, fixed_abs, tag = 'smem constant byte address 0x4 - core index']
  #allocation1 [shape = 'u32[144,128]{1,0:T(1,128)}', space=vmem, size = 0x12000, scoped, tag = 'internal scratch']
  %s0 = inlined_call_operand.hbm [shape: f32[8,128], index: 0, kind: input, shape index: {}]
  %s1 = inlined_call_operand.hbm [shape: bf16[128,256], index: 1, kind: input, shape index: {}]
  %s2 = inlined_call_operand.vmem [shape: f32[1,256], index: 2, kind: input, shape index: {}]
  %s3 = inlined_call_operand.hbm [shape: bf16[256,256], index: 3, kind: input, shape index: {}]
  %s4 = inlined_call_operand.vmem [shape: f32[1,256], index: 4, kind: input, shape index: {}]
  %s5 = inlined_call_operand.hbm [shape: bf16[128,128], index: 5, kind: input, shape index: {}]
  %s6 = inlined_call_operand.hbm [shape: f32[64,128], index: 6, kind: input, shape index: {}]
  %s7 = inlined_call_operand.vmem [shape: f32[1,64], index: 7, kind: input, shape index: {}]
  %s8 = inlined_call_operand.hbm [shape: f32[8,128], index: 8, kind: output, shape index: {0}]
  %s9 = inlined_call_operand.hbm [shape: f32[64,128], index: 9, kind: output, shape index: {1}]
  %s10 = inlined_call_operand.hbm [shape: f32[1,128], index: 10, kind: output, shape index: {2}]
  %11 = xla_tuple %s8, %s9, %s10
  %s12 = sld [smem:[#allocation0]]
  $region78: #{tpu_custom_call.1} parent=0
    _
  %s14 = ssub.s32 1, %s12
  %s15 = scalar_select 0, %s14, %s12
  $region1: #{tpu_custom_call.1} parent=0
    #allocation2 [shape = 'u8[4096]{0}', space=vmem, size = 0x1000, scoped, tag = 'input window, operand 0, single buffered']
    #allocation3 [shape = 's32[1]{0}', space=sflag, size = 0x4, scoped, tag = 'scoped memory for tpu_custom_call.1']
    #allocation4 [shape = 's32[1]{0}', space=sflag, size = 0x4, scoped, tag = 'scoped memory for tpu_custom_call.1']
    #allocation5 [shape = 'u8[65536]{0}', space=vmem, size = 0x10000, scoped, tag = 'input window, operand 1, single buffered']
    #allocation6 [shape = 's32[1]{0}', space=sflag, size = 0x4, scoped, tag = 'scoped memory for tpu_custom_call.1']
    #allocation7 [shape = 'u8[131072]{0}', space=vmem, size = 0x20000, scoped, tag = 'input window, operand 3, single buffered']
    #allocation8 [shape = 'u8[32768]{0}', space=vmem, size = 0x8000, scoped, tag = 'input window, operand 5, single buffered']
    #allocation9 [shape = 's32[1]{0}', space=sflag, size = 0x4, scoped, tag = 'scoped memory for tpu_custom_call.1']
    #allocation10 [shape = 'u8[32768]{0}', space=vmem, size = 0x8000, scoped, tag = 'input window, operand 6, single buffered']
    #allocation11 [shape = 'u8[4096]{0}', space=vmem, size = 0x1000, scoped, tag = 'output window, operand 0, single buffered']
    #allocation12 [shape = 'u8[32768]{0}', space=vmem, size = 0x8000, scoped, tag = 'output window, operand 1, single buffered']
    #allocation13 [shape = 's32[1]{0}', space=sflag, size = 0x4, scoped, tag = 'scoped memory for tpu_custom_call.1']
    #allocation14 [shape = 'u8[512]{0}', space=vmem, size = 0x400, scoped, tag = 'output window, operand 2, single buffered']
    %16 = vsyncpa [#allocation3], 0
    %17 = vsyncpa [#allocation6], 0
    %18 = vsyncpa [#allocation9], 0
    %19 = vsyncpa [#allocation4], 0
    %20 = vsyncpa [#allocation13], 0
    // Predicated region
    $region2: #{tpu_custom_call.1} parent=1 // pred_check
      _
    $region3: #{tpu_custom_call.1} parent=1 // pred_check_branch
      %22 = sbr.rel (0) target = $region5
    $region4: #{tpu_custom_call.1} parent=1 // pred_region
      %s24 = ssub.s32 128, 128
      %25 = vsyncadd [#allocation3], %s24
      %s27 = sshll.u32 [#allocation2], 4
      %s28 = int_to_ptr.vmem [resolvable:$true] %s27
      %30 = dma.hbm_to_vmem [thread:$0]  %s0, 128, %s28, [#allocation3]
    $region5: #{tpu_custom_call.1} parent=1 // pred_fallthru
      _
    // Predicated region
    $region6: #{tpu_custom_call.1} parent=1 // pred_check
      _
    $region7: #{tpu_custom_call.1} parent=1 // pred_check_branch
      %32 = sbr.rel (0) target = $region9
    $region8: #{tpu_custom_call.1} parent=1 // pred_region
      %s34 = ssub.s32 2048, 2048
      %35 = vsyncadd [#allocation6], %s34
      %s36 = sshll.u32 [#allocation5], 4
      %s37 = int_to_ptr.vmem [resolvable:$true] %s36
      %42 = dma.hbm_to_vmem [thread:$0]  %s1, 2048, %s37, [#allocation6], 128, 128, 8
    $region9: #{tpu_custom_call.1} parent=1 // pred_fallthru
      _
    // Predicated region
    $region10: #{tpu_custom_call.1} parent=1 // pred_check
      _
    $region11: #{tpu_custom_call.1} parent=1 // pred_check_branch
      %44 = sbr.rel (0) target = $region13
    $region12: #{tpu_custom_call.1} parent=1 // pred_region
      _
    $region13: #{tpu_custom_call.1} parent=1 // pred_fallthru
      _
    // Predicated region
    $region14: #{tpu_custom_call.1} parent=1 // pred_check
      _
    $region15: #{tpu_custom_call.1} parent=1 // pred_check_branch
      %46 = sbr.rel (0) target = $region17
    $region16: #{tpu_custom_call.1} parent=1 // pred_region
      %s48 = ssub.s32 4096, 4096
      %49 = vsyncadd [#allocation6], %s48
      %s50 = sshll.u32 [#allocation7], 4
      %s51 = int_to_ptr.vmem [resolvable:$true] %s50
      %56 = dma.hbm_to_vmem [thread:$0]  %s3, 4096, %s51, [#allocation6], 128, 128, 8
    $region17: #{tpu_custom_call.1} parent=1 // pred_fallthru
      _
    // Predicated region
    $region18: #{tpu_custom_call.1} parent=1 // pred_check
      _
    $region19: #{tpu_custom_call.1} parent=1 // pred_check_branch
      %58 = sbr.rel (0) target = $region21
    $region20: #{tpu_custom_call.1} parent=1 // pred_region
      _
    $region21: #{tpu_custom_call.1} parent=1 // pred_fallthru
      _
    // Predicated region
    $region22: #{tpu_custom_call.1} parent=1 // pred_check
      _
    $region23: #{tpu_custom_call.1} parent=1 // pred_check_branch
      %60 = sbr.rel (0) target = $region25
    $region24: #{tpu_custom_call.1} parent=1 // pred_region
      %s62 = ssub.s32 1024, 1024
      %63 = vsyncadd [#allocation9], %s62
      %s64 = sshll.u32 [#allocation8], 4
      %s65 = int_to_ptr.vmem [resolvable:$true] %s64
      %70 = dma.hbm_to_vmem [thread:$0]  %s5, 1024, %s65, [#allocation9], 64, 64, 4
    $region25: #{tpu_custom_call.1} parent=1 // pred_fallthru
      _
    // Predicated region
    $region26: #{tpu_custom_call.1} parent=1 // pred_check
      _
    $region27: #{tpu_custom_call.1} parent=1 // pred_check_branch
      %72 = sbr.rel (0) target = $region29
    $region28: #{tpu_custom_call.1} parent=1 // pred_region
      %s74 = ssub.s32 1024, 1024
      %75 = vsyncadd [#allocation9], %s74
      %s76 = sshll.u32 [#allocation10], 4
      %s77 = int_to_ptr.vmem [resolvable:$true] %s76
      %82 = dma.hbm_to_vmem [thread:$0]  %s6, 1024, %s77, [#allocation9], 128, 128, 8
    $region29: #{tpu_custom_call.1} parent=1 // pred_fallthru
      _
    // Predicated region
    $region30: #{tpu_custom_call.1} parent=1 // pred_check
      _
    $region31: #{tpu_custom_call.1} parent=1 // pred_check_branch
      %84 = sbr.rel (0) target = $region33
    $region32: #{tpu_custom_call.1} parent=1 // pred_region
      _
    $region33: #{tpu_custom_call.1} parent=1 // pred_fallthru
      _
    // Predicated region
    $region34: #{tpu_custom_call.1} parent=1 // pred_check
      _
    $region35: #{tpu_custom_call.1} parent=1 // pred_check_branch
      %86 = sbr.rel (0) target = $region37
    $region36: #{tpu_custom_call.1} parent=1 // pred_region
      %87 = dma.done [#allocation3], 128
    $region37: #{tpu_custom_call.1} parent=1 // pred_fallthru
      _
    // Predicated region
    $region38: #{tpu_custom_call.1} parent=1 // pred_check
      _
    $region39: #{tpu_custom_call.1} parent=1 // pred_check_branch
      %89 = sbr.rel (0) target = $region41
    $region40: #{tpu_custom_call.1} parent=1 // pred_region
      %90 = dma.done [#allocation6], 2048
    $region41: #{tpu_custom_call.1} parent=1 // pred_fallthru
      _
    // Predicated region
    $region42: #{tpu_custom_call.1} parent=1 // pred_check
      _
    $region43: #{tpu_custom_call.1} parent=1 // pred_check_branch
      %92 = sbr.rel (0) target = $region45
    $region44: #{tpu_custom_call.1} parent=1 // pred_region
      %93 = dma.done [#allocation6], 4096
    $region45: #{tpu_custom_call.1} parent=1 // pred_fallthru
      _
    // Predicated region
    $region46: #{tpu_custom_call.1} parent=1 // pred_check
      _
    $region47: #{tpu_custom_call.1} parent=1 // pred_check_branch
      %95 = sbr.rel (0) target = $region49
    $region48: #{tpu_custom_call.1} parent=1 // pred_region
      %96 = dma.done [#allocation9], 1024
    $region49: #{tpu_custom_call.1} parent=1 // pred_fallthru
      _
    // Predicated region
    $region50: #{tpu_custom_call.1} parent=1 // pred_check
      _
    $region51: #{tpu_custom_call.1} parent=1 // pred_check_branch
      %98 = sbr.rel (0) target = $region53
    $region52: #{tpu_custom_call.1} parent=1 // pred_region
      %99 = dma.done [#allocation9], 1024
    $region53: #{tpu_custom_call.1} parent=1 // pred_fallthru
      _
    %v101 = vld [vmem:[#allocation2] sm:$0xff]
    %v102 = vpack.c.bf16 %v101, %v101
    %v103 = vld [vmem:[#allocation5] sm:$0xff]
    %v104 = vld [vmem:[#allocation5 + $0x8] sm:$0xff]
    %v105 = vld [vmem:[#allocation5 + $0x10] sm:$0xff]
    %v106 = vld [vmem:[#allocation5 + $0x18] sm:$0xff]
    %v107 = vld [vmem:[#allocation5 + $0x20] sm:$0xff]
    %v108 = vld [vmem:[#allocation5 + $0x28] sm:$0xff]
    %v109 = vld [vmem:[#allocation5 + $0x30] sm:$0xff]
    %v110 = vld [vmem:[#allocation5 + $0x38] sm:$0xff]
    %v111 = vld [vmem:[#allocation5 + $0x40] sm:$0xff]
    %v112 = vld [vmem:[#allocation5 + $0x48] sm:$0xff]
    %v113 = vld [vmem:[#allocation5 + $0x50] sm:$0xff]
    %v114 = vld [vmem:[#allocation5 + $0x58] sm:$0xff]
    %v115 = vld [vmem:[#allocation5 + $0x60] sm:$0xff]
    %v116 = vld [vmem:[#allocation5 + $0x68] sm:$0xff]
    %v117 = vld [vmem:[#allocation5 + $0x70] sm:$0xff]
    %v118 = vld [vmem:[#allocation5 + $0x78] sm:$0xff]
    %v119 = vld [vmem:[%s2] sm:$0x3]
    %v121 = vlaneseq
    %v122 = vshrl.u32 %v121, 7
    %v123 = vsub.s32 0, %v122
    %v124 = vrot.slane %v119, %v123
    %v125 = vlaneseq
    %v126 = vshrl.u32 %v125, 7
    %v127 = vsub.s32 1, %v126
    %v128 = vrot.slane %v119, %v127
    %v147 = vunpack.c.l.b16 %v103
    %v148 = vunpack.c.h.b16 %v103
    %v149 = vunpack.c.l.b16 %v104
    %v150 = vunpack.c.h.b16 %v104
    %v151 = vunpack.c.l.b16 %v105
    %v152 = vunpack.c.h.b16 %v105
    %v153 = vunpack.c.l.b16 %v106
    %v154 = vunpack.c.h.b16 %v106
    %v155 = vunpack.c.l.b16 %v107
    %v156 = vunpack.c.h.b16 %v107
    %v157 = vunpack.c.l.b16 %v108
    %v158 = vunpack.c.h.b16 %v108
    %v159 = vunpack.c.l.b16 %v109
    %v160 = vunpack.c.h.b16 %v109
    %v161 = vunpack.c.l.b16 %v110
    %v162 = vunpack.c.h.b16 %v110
    %v163 = vunpack.c.l.b16 %v111
    %v164 = vunpack.c.h.b16 %v111
    %v165 = vunpack.c.l.b16 %v112
    %v166 = vunpack.c.h.b16 %v112
    %v167 = vunpack.c.l.b16 %v113
    %v168 = vunpack.c.h.b16 %v113
    %v169 = vunpack.c.l.b16 %v114
    %v170 = vunpack.c.h.b16 %v114
    %v171 = vunpack.c.l.b16 %v115
    %v172 = vunpack.c.h.b16 %v115
    %v173 = vunpack.c.l.b16 %v116
    %v174 = vunpack.c.h.b16 %v116
    %v175 = vunpack.c.l.b16 %v117
    %v176 = vunpack.c.h.b16 %v117
    %v177 = vunpack.c.l.b16 %v118
    %v178 = vunpack.c.h.b16 %v118
    %v179 = vpack.c.b16 %v149, %v147
    %v180 = vpack.c.b16 %v150, %v148
    %v181 = vpack.c.b16 %v153, %v151
    %v182 = vpack.c.b16 %v154, %v152
    %v183 = vpack.c.b16 %v157, %v155
    %v184 = vpack.c.b16 %v158, %v156
    %v185 = vpack.c.b16 %v161, %v159
    %v186 = vpack.c.b16 %v162, %v160
    %v187 = vpack.c.b16 %v165, %v163
    %v188 = vpack.c.b16 %v166, %v164
    %v189 = vpack.c.b16 %v169, %v167
    %v190 = vpack.c.b16 %v170, %v168
    %v191 = vpack.c.b16 %v173, %v171
    %v192 = vpack.c.b16 %v174, %v172
    %v193 = vpack.c.b16 %v177, %v175
    %v194 = vpack.c.b16 %v178, %v176
    %211 = vmatprep.subr.bf16.mxu0 %v180
    %212 = vmatpush1.bf16.msra.mxu0 %v179
    %213 = vmatprep.subr.bf16.mxu0 %v182
    %214 = vmatpush1.bf16.msra.mxu0 %v181
    %215 = vmatprep.subr.bf16.mxu0 %v184
    %216 = vmatpush1.bf16.msra.mxu0 %v183
    %217 = vmatprep.subr.bf16.mxu0 %v186
    %218 = vmatpush1.bf16.msra.mxu0 %v185
    %219 = vmatprep.subr.bf16.mxu0 %v188
    %220 = vmatpush1.bf16.msra.mxu0 %v187
    %221 = vmatprep.subr.bf16.mxu0 %v190
    %222 = vmatpush1.bf16.msra.mxu0 %v189
    %223 = vmatprep.subr.bf16.mxu0 %v192
    %224 = vmatpush1.bf16.msra.mxu0 %v191
    %225 = vmatprep.subr.bf16.mxu0 %v194
    %226 = vmatpush1.bf16.msra.mxu0 %v193
    %227 = vmatprep.subr.bf16.mxu0 0
    %228 = vmatpush1.bf16.msra.mxu0 0
    %229 = vmatprep.subr.bf16.mxu0 0
    %230 = vmatpush1.bf16.msra.mxu0 0
    %231 = vmatprep.subr.bf16.mxu0 0
    %232 = vmatpush1.bf16.msra.mxu0 0
    %233 = vmatprep.subr.bf16.mxu0 0
    %234 = vmatpush1.bf16.msra.mxu0 0
    %235 = vmatprep.subr.bf16.mxu0 0
    %236 = vmatpush1.bf16.msra.mxu0 0
    %237 = vmatprep.subr.bf16.mxu0 0
    %238 = vmatpush1.bf16.msra.mxu0 0
    %239 = vmatprep.subr.bf16.mxu0 0
    %240 = vmatpush1.bf16.msra.mxu0 0
    %241 = vmatprep.subr.bf16.mxu0 0
    %242 = vmatpush1.bf16.msra.mxu0 0
    %243 = vmatprep.mubr.bf16.mxu0 0
    %244 = vmatmul.mubr.bf16.gmra.mrb[0].mxu0 %v102
    %v245 = vpop.f32.mrb[0].mxu0
    %v246 = vadd.f32 %v124, %v245
    %v247 = vpop.f32.mrb[0].mxu0
    %v248 = vadd.f32 %v128, %v247
    %v249 = vpop.f32.mrb[0].mxu0
    %v250 = vpop.f32.mrb[0].mxu0
    %251 = vdwg.mxu0
    %v252 = vtanh.pop %v246
    %v253 = vtanh.pop %v248
    %v254 = vpack.c.bf16 %v252, %v252
    %v255 = vpack.c.bf16 %v253, %v253
    %v256 = vld [vmem:[#allocation7] sm:$0xff]
    %v257 = vld [vmem:[#allocation7 + $0x8] sm:$0xff]
    %v258 = vld [vmem:[#allocation7 + $0x10] sm:$0xff]
    %v259 = vld [vmem:[#allocation7 + $0x18] sm:$0xff]
    %v260 = vld [vmem:[#allocation7 + $0x20] sm:$0xff]
    %v261 = vld [vmem:[#allocation7 + $0x28] sm:$0xff]
    %v262 = vld [vmem:[#allocation7 + $0x30] sm:$0xff]
    %v263 = vld [vmem:[#allocation7 + $0x38] sm:$0xff]
    %v264 = vld [vmem:[#allocation7 + $0x40] sm:$0xff]
    %v265 = vld [vmem:[#allocation7 + $0x48] sm:$0xff]
    %v266 = vld [vmem:[#allocation7 + $0x50] sm:$0xff]
    %v267 = vld [vmem:[#allocation7 + $0x58] sm:$0xff]
    %v268 = vld [vmem:[#allocation7 + $0x60] sm:$0xff]
    %v269 = vld [vmem:[#allocation7 + $0x68] sm:$0xff]
    %v270 = vld [vmem:[#allocation7 + $0x70] sm:$0xff]
    %v271 = vld [vmem:[#allocation7 + $0x78] sm:$0xff]
    %v272 = vld [vmem:[#allocation7 + $0x80] sm:$0xff]
    %v273 = vld [vmem:[#allocation7 + $0x88] sm:$0xff]
    %v274 = vld [vmem:[#allocation7 + $0x90] sm:$0xff]
    %v275 = vld [vmem:[#allocation7 + $0x98] sm:$0xff]
    %v276 = vld [vmem:[#allocation7 + $0xa0] sm:$0xff]
    %v277 = vld [vmem:[#allocation7 + $0xa8] sm:$0xff]
    %v278 = vld [vmem:[#allocation7 + $0xb0] sm:$0xff]
    %v279 = vld [vmem:[#allocation7 + $0xb8] sm:$0xff]
    %v280 = vld [vmem:[#allocation7 + $0xc0] sm:$0xff]
    %v281 = vld [vmem:[#allocation7 + $0xc8] sm:$0xff]
    %v282 = vld [vmem:[#allocation7 + $0xd0] sm:$0xff]
    %v283 = vld [vmem:[#allocation7 + $0xd8] sm:$0xff]
    %v284 = vld [vmem:[#allocation7 + $0xe0] sm:$0xff]
    %v285 = vld [vmem:[#allocation7 + $0xe8] sm:$0xff]
    %v286 = vld [vmem:[#allocation7 + $0xf0] sm:$0xff]
    %v287 = vld [vmem:[#allocation7 + $0xf8] sm:$0xff]
    %v288 = vld [vmem:[%s4] sm:$0x3]
    %v290 = vlaneseq
    %v291 = vshrl.u32 %v290, 7
    %v292 = vsub.s32 0, %v291
    %v293 = vrot.slane %v288, %v292
    %v294 = vlaneseq
    %v295 = vshrl.u32 %v294, 7
    %v296 = vsub.s32 1, %v295
    %v297 = vrot.slane %v288, %v296
    %v332 = vunpack.c.l.b16 %v256
    %v333 = vunpack.c.h.b16 %v256
    %v334 = vunpack.c.l.b16 %v257
    %v335 = vunpack.c.h.b16 %v257
    %v336 = vunpack.c.l.b16 %v258
    %v337 = vunpack.c.h.b16 %v258
    %v338 = vunpack.c.l.b16 %v259
    %v339 = vunpack.c.h.b16 %v259
    %v340 = vunpack.c.l.b16 %v260
    %v341 = vunpack.c.h.b16 %v260
    %v342 = vunpack.c.l.b16 %v261
    %v343 = vunpack.c.h.b16 %v261
    %v344 = vunpack.c.l.b16 %v262
    %v345 = vunpack.c.h.b16 %v262
    %v346 = vunpack.c.l.b16 %v263
    %v347 = vunpack.c.h.b16 %v263
    %v348 = vunpack.c.l.b16 %v264
    %v349 = vunpack.c.h.b16 %v264
    %v350 = vunpack.c.l.b16 %v265
    %v351 = vunpack.c.h.b16 %v265
    %v352 = vunpack.c.l.b16 %v266
    %v353 = vunpack.c.h.b16 %v266
    %v354 = vunpack.c.l.b16 %v267
    %v355 = vunpack.c.h.b16 %v267
    %v356 = vunpack.c.l.b16 %v268
    %v357 = vunpack.c.h.b16 %v268
    %v358 = vunpack.c.l.b16 %v269
    %v359 = vunpack.c.h.b16 %v269
    %v360 = vunpack.c.l.b16 %v270
    %v361 = vunpack.c.h.b16 %v270
    %v362 = vunpack.c.l.b16 %v271
    %v363 = vunpack.c.h.b16 %v271
    %v364 = vunpack.c.l.b16 %v272
    %v365 = vunpack.c.h.b16 %v272
    %v366 = vunpack.c.l.b16 %v273
    %v367 = vunpack.c.h.b16 %v273
    %v368 = vunpack.c.l.b16 %v274
    %v369 = vunpack.c.h.b16 %v274
    %v370 = vunpack.c.l.b16 %v275
    %v371 = vunpack.c.h.b16 %v275
    %v372 = vunpack.c.l.b16 %v276
    %v373 = vunpack.c.h.b16 %v276
    %v374 = vunpack.c.l.b16 %v277
    %v375 = vunpack.c.h.b16 %v277
    %v376 = vunpack.c.l.b16 %v278
    %v377 = vunpack.c.h.b16 %v278
    %v378 = vunpack.c.l.b16 %v279
    %v379 = vunpack.c.h.b16 %v279
    %v380 = vunpack.c.l.b16 %v280
    %v381 = vunpack.c.h.b16 %v280
    %v382 = vunpack.c.l.b16 %v281
    %v383 = vunpack.c.h.b16 %v281
    %v384 = vunpack.c.l.b16 %v282
    %v385 = vunpack.c.h.b16 %v282
    %v386 = vunpack.c.l.b16 %v283
    %v387 = vunpack.c.h.b16 %v283
    %v388 = vunpack.c.l.b16 %v284
    %v389 = vunpack.c.h.b16 %v284
    %v390 = vunpack.c.l.b16 %v285
    %v391 = vunpack.c.h.b16 %v285
    %v392 = vunpack.c.l.b16 %v286
    %v393 = vunpack.c.h.b16 %v286
    %v394 = vunpack.c.l.b16 %v287
    %v395 = vunpack.c.h.b16 %v287
    %v396 = vpack.c.b16 %v334, %v332
    %v397 = vpack.c.b16 %v335, %v333
    %v398 = vpack.c.b16 %v338, %v336
    %v399 = vpack.c.b16 %v339, %v337
    %v400 = vpack.c.b16 %v342, %v340
    %v401 = vpack.c.b16 %v343, %v341
    %v402 = vpack.c.b16 %v346, %v344
    %v403 = vpack.c.b16 %v347, %v345
    %v404 = vpack.c.b16 %v350, %v348
    %v405 = vpack.c.b16 %v351, %v349
    %v406 = vpack.c.b16 %v354, %v352
    %v407 = vpack.c.b16 %v355, %v353
    %v408 = vpack.c.b16 %v358, %v356
    %v409 = vpack.c.b16 %v359, %v357
    %v410 = vpack.c.b16 %v362, %v360
    %v411 = vpack.c.b16 %v363, %v361
    %v412 = vpack.c.b16 %v366, %v364
    %v413 = vpack.c.b16 %v367, %v365
    %v414 = vpack.c.b16 %v370, %v368
    %v415 = vpack.c.b16 %v371, %v369
    %v416 = vpack.c.b16 %v374, %v372
    %v417 = vpack.c.b16 %v375, %v373
    %v418 = vpack.c.b16 %v378, %v376
    %v419 = vpack.c.b16 %v379, %v377
    %v420 = vpack.c.b16 %v382, %v380
    %v421 = vpack.c.b16 %v383, %v381
    %v422 = vpack.c.b16 %v386, %v384
    %v423 = vpack.c.b16 %v387, %v385
    %v424 = vpack.c.b16 %v390, %v388
    %v425 = vpack.c.b16 %v391, %v389
    %v426 = vpack.c.b16 %v394, %v392
    %v427 = vpack.c.b16 %v395, %v393
    %460 = vmatprep.subr.bf16.mxu0 %v397
    %461 = vmatpush1.bf16.msra.mxu0 %v396
    %462 = vmatprep.subr.bf16.mxu0 %v399
    %463 = vmatpush1.bf16.msra.mxu0 %v398
    %464 = vmatprep.subr.bf16.mxu0 %v401
    %465 = vmatpush1.bf16.msra.mxu0 %v400
    %466 = vmatprep.subr.bf16.mxu0 %v403
    %467 = vmatpush1.bf16.msra.mxu0 %v402
    %468 = vmatprep.subr.bf16.mxu0 %v405
    %469 = vmatpush1.bf16.msra.mxu0 %v404
    %470 = vmatprep.subr.bf16.mxu0 %v407
    %471 = vmatpush1.bf16.msra.mxu0 %v406
    %472 = vmatprep.subr.bf16.mxu0 %v409
    %473 = vmatpush1.bf16.msra.mxu0 %v408
    %474 = vmatprep.subr.bf16.mxu0 %v411
    %475 = vmatpush1.bf16.msra.mxu0 %v410
    %476 = vmatprep.subr.bf16.mxu0 %v413
    %477 = vmatpush1.bf16.msra.mxu0 %v412
    %478 = vmatprep.subr.bf16.mxu0 %v415
    %479 = vmatpush1.bf16.msra.mxu0 %v414
    %480 = vmatprep.subr.bf16.mxu0 %v417
    %481 = vmatpush1.bf16.msra.mxu0 %v416
    %482 = vmatprep.subr.bf16.mxu0 %v419
    %483 = vmatpush1.bf16.msra.mxu0 %v418
    %484 = vmatprep.subr.bf16.mxu0 %v421
    %485 = vmatpush1.bf16.msra.mxu0 %v420
    %486 = vmatprep.subr.bf16.mxu0 %v423
    %487 = vmatpush1.bf16.msra.mxu0 %v422
    %488 = vmatprep.subr.bf16.mxu0 %v425
    %489 = vmatpush1.bf16.msra.mxu0 %v424
    %490 = vmatprep.subr.bf16.mxu0 %v427
    %491 = vmatpush1.bf16.msra.mxu0 %v426
    %492 = vmatprep.mubr.bf16.mxu0 %v255
    %493 = vmatmul.mubr.bf16.gmra.mrb[0].mxu0 %v254
    %v494 = vpop.f32.mrb[0].mxu0
    %v495 = vadd.f32 %v293, %v494
    %v496 = vpop.f32.mrb[0].mxu0
    %v497 = vadd.f32 %v297, %v496
    %v498 = vpop.f32.mrb[0].mxu0
    %v499 = vpop.f32.mrb[0].mxu0
    %500 = vdwg.mxu0
    %v501 = vand.u32 2147483647, %v495
    %vm502 = vcmp.le.f32.partialorder %v501, 0.7853982
    %vm503 = vcmp.lt.s32.totalorder %v495, 0
    %v504 = vand.u32 %v495, 2139095040
    %v505 = vshrl.u32 %v504, 23
    %v506 = vsub.s32 %v505, 127
    %v507 = vand.u32 2147483647, %v495
    %v508 = vand.u32 %v507, 8388607
    %v509 = vor.u32 %v508, 8388608
    %v510 = vsub.s32 0, %v509
    %v511 = vadd.s32 %v506, 1
    %vm512 = vcmp.gt.s32.totalorder %v511, 0
    %v513 = vsel %vm512, %v511, 0
    %v514 = vshrl.u32 %v513, 5
    %v515 = vand.u32 %v513, 31
    %v516 = vsub.s32 32, %v515
    %v517 = vshrl.u32 683565275, %v516
    %v518 = vshll.u32 683565275, %v515
    %v519 = vshrl.u32 2475754826, %v516
    %v520 = vor.u32 %v518, %v519
    %v521 = vshll.u32 2475754826, %v515
    %v522 = vshrl.u32 2131351028, %v516
    %v523 = vor.u32 %v521, %v522
    %v524 = vshll.u32 2131351028, %v515
    %v525 = vshrl.u32 2102212464, %v516
    %v526 = vor.u32 %v524, %v525
    %v527 = vshll.u32 2102212464, %v515
    %v528 = vshrl.u32 920167782, %v516
    %v529 = vor.u32 %v527, %v528
    %v530 = vshll.u32 920167782, %v515
    %v531 = vshrl.u32 1326507024, %v516
    %v532 = vor.u32 %v530, %v531
    %vm533 = vcmp.lt.s32.totalorder %v514, 1
    %vm534 = vcmp.lt.s32.totalorder %v514, 2
    %vm535 = vcmp.lt.s32.totalorder %v514, 3
    %vm536 = vcmp.lt.s32.totalorder %v514, 4
    %v537 = vsel %vm533, %v517, %v520
    %v538 = vsel %vm536, %v526, 2102212464
    %v539 = vsel %vm535, %v523, %v538
    %v540 = vsel %vm534, %v537, %v539
    %v541 = vsel %vm533, %v520, %v523
    %v542 = vsel %vm536, %v529, 920167782
    %v543 = vsel %vm535, %v526, %v542
    %v544 = vsel %vm534, %v541, %v543
    %v545 = vsel %vm533, %v523, %v526
    %v546 = vsel %vm536, %v532, 1326507024
    %v547 = vsel %vm535, %v529, %v546
    %v548 = vsel %vm534, %v545, %v547
    %v549 = vshll.u32 %v509, 8
    %v550 = vmul.u32.u64.compose %v549, %v548
    %v551 = vextract.low.u32 %v550
    %v552 = vextract.high.u32 %v550
    %v553 = vmul.u32.u64.compose %v549, %v544
    %v554 = vextract.low.u32 %v553
    %v555 = vextract.high.u32 %v553
    %v556 = vmul.u32 %v549, %v540
    %v557 = vadd.s32 %v552, %v554
    %vm558 = vc.u32 %v552, %v554
    %v559 = vadd.s32 %v555, 1
    %v560 = vsel %vm558, %v559, %v555
    %v561 = vadd.s32 %v556, %v560
    %v562 = vadd.s32 %v561, 536870912
    %v563 = vshrl.u32 %v562, 30
    %v564 = vshll.u32 %v563, 30
    %v565 = vsub.s32 %v561, %v564
    %vm566 = vcmp.lt.s32.totalorder %v565, 0
    %v567 = vsub.s32 0, %v565
    %v568 = vsel %vm566, %v567, %v565
    %v569 = vclz %v568
    %v570 = vsub.s32 %v569, 2
    %vm571 = vcmp.gt.s32.totalorder 0, %v570
    %v572 = vsel %vm571, 0, %v570
    %v573 = vsub.s32 32, %v572
    %v574 = vshll.u32 %v565, %v572
    %v575 = vshrl.u32 %v557, %v573
    %v576 = vor.u32 %v574, %v575
    %v577 = vsub.s32 4294967266, %v572
    %v578 = vadd.s32 %v577, 127
    %v579 = vshll.u32 %v578, 23
    %v580 = vor.u32 4788187, %v579
    %v581 = vand.u32 2147483647, %v580
    %v583 = vcvt.s32.f32 %v576
    %v584 = vmul.f32 %v583, %v581
    %v585 = vxor.u32 %v584, 2147483648
    %v586 = vsel %vm503, %v585, %v584
    %v587 = vsub.s32 4, %v563
    %v588 = vsel %vm503, %v587, %v563
    %v589 = vsel %vm502, %v495, %v586
    %v590 = vsel %vm502, 0, %v588
    %v591 = vcosq.f32.pop %v589
    %v592 = vsinq.f32.pop %v589
    %vm593 = vweird.f32 %v495
    %v594 = vand.u32 %v590, 3
    %vm595 = vcmp.lt.s32.totalorder %v594, 2
    %vm596 = vcmp.eq.s32.totalorder %v594, 0
    %v597 = vxor.u32 %v592, 2147483648
    %v598 = vsel %vm596, %v591, %v597
    %vm599 = vcmp.eq.s32.totalorder %v594, 2
    %v600 = vxor.u32 %v591, 2147483648
    %v601 = vsel %vm599, %v600, %v592
    %v602 = vsel %vm595, %v598, %v601
    %v603 = vsel %vm593, nan, %v602
    %605 = vrot.lane.b32.xlu0 %v603, 64
    %v606 = vpop.permute.xlu0 %605
    %v608 = vmul.f32 %v495, %v606
    %v609 = vand.u32 2147483647, %v495
    %vm610 = vcmp.le.f32.partialorder %v609, 0.7853982
    %vm611 = vcmp.lt.s32.totalorder %v495, 0
    %v612 = vand.u32 %v495, 2139095040
    %v613 = vshrl.u32 %v612, 23
    %v614 = vsub.s32 %v613, 127
    %v615 = vand.u32 2147483647, %v495
    %v616 = vand.u32 %v615, 8388607
    %v617 = vor.u32 %v616, 8388608
    %v618 = vsub.s32 0, %v617
    %v619 = vadd.s32 %v614, 1
    %vm620 = vcmp.gt.s32.totalorder %v619, 0
    %v621 = vsel %vm620, %v619, 0
    %v622 = vshrl.u32 %v621, 5
    %v623 = vand.u32 %v621, 31
    %v624 = vsub.s32 32, %v623
    %v625 = vshrl.u32 683565275, %v624
    %v626 = vshll.u32 683565275, %v623
    %v627 = vshrl.u32 2475754826, %v624
    %v628 = vor.u32 %v626, %v627
    %v629 = vshll.u32 2475754826, %v623
    %v630 = vshrl.u32 2131351028, %v624
    %v631 = vor.u32 %v629, %v630
    %v632 = vshll.u32 2131351028, %v623
    %v633 = vshrl.u32 2102212464, %v624
    %v634 = vor.u32 %v632, %v633
    %v635 = vshll.u32 2102212464, %v623
    %v636 = vshrl.u32 920167782, %v624
    %v637 = vor.u32 %v635, %v636
    %v638 = vshll.u32 920167782, %v623
    %v639 = vshrl.u32 1326507024, %v624
    %v640 = vor.u32 %v638, %v639
    %vm641 = vcmp.lt.s32.totalorder %v622, 1
    %vm642 = vcmp.lt.s32.totalorder %v622, 2
    %vm643 = vcmp.lt.s32.totalorder %v622, 3
    %vm644 = vcmp.lt.s32.totalorder %v622, 4
    %v645 = vsel %vm641, %v625, %v628
    %v646 = vsel %vm644, %v634, 2102212464
    %v647 = vsel %vm643, %v631, %v646
    %v648 = vsel %vm642, %v645, %v647
    %v649 = vsel %vm641, %v628, %v631
    %v650 = vsel %vm644, %v637, 920167782
    %v651 = vsel %vm643, %v634, %v650
    %v652 = vsel %vm642, %v649, %v651
    %v653 = vsel %vm641, %v631, %v634
    %v654 = vsel %vm644, %v640, 1326507024
    %v655 = vsel %vm643, %v637, %v654
    %v656 = vsel %vm642, %v653, %v655
    %v657 = vshll.u32 %v617, 8
    %v658 = vmul.u32.u64.compose %v657, %v656
    %v659 = vextract.low.u32 %v658
    %v660 = vextract.high.u32 %v658
    %v661 = vmul.u32.u64.compose %v657, %v652
    %v662 = vextract.low.u32 %v661
    %v663 = vextract.high.u32 %v661
    %v664 = vmul.u32 %v657, %v648
    %v665 = vadd.s32 %v660, %v662
    %vm666 = vc.u32 %v660, %v662
    %v667 = vadd.s32 %v663, 1
    %v668 = vsel %vm666, %v667, %v663
    %v669 = vadd.s32 %v664, %v668
    %v670 = vadd.s32 %v669, 536870912
    %v671 = vshrl.u32 %v670, 30
    %v672 = vshll.u32 %v671, 30
    %v673 = vsub.s32 %v669, %v672
    %vm674 = vcmp.lt.s32.totalorder %v673, 0
    %v675 = vsub.s32 0, %v673
    %v676 = vsel %vm674, %v675, %v673
    %v677 = vclz %v676
    %v678 = vsub.s32 %v677, 2
    %vm679 = vcmp.gt.s32.totalorder 0, %v678
    %v680 = vsel %vm679, 0, %v678
    %v681 = vsub.s32 32, %v680
    %v682 = vshll.u32 %v673, %v680
    %v683 = vshrl.u32 %v665, %v681
    %v684 = vor.u32 %v682, %v683
    %v685 = vsub.s32 4294967266, %v680
    %v686 = vadd.s32 %v685, 127
    %v687 = vshll.u32 %v686, 23
    %v688 = vor.u32 4788187, %v687
    %v689 = vand.u32 2147483647, %v688
    %v691 = vcvt.s32.f32 %v684
    %v692 = vmul.f32 %v691, %v689
    %v693 = vxor.u32 %v692, 2147483648
    %v694 = vsel %vm611, %v693, %v692
    %v695 = vsub.s32 4, %v671
    %v696 = vsel %vm611, %v695, %v671
    %v697 = vsel %vm610, %v495, %v694
    %v698 = vsel %vm610, 0, %v696
    %v699 = vcosq.f32.pop %v697
    %v700 = vsinq.f32.pop %v697
    %vm701 = vweird.f32 %v495
    %v702 = vadd.s32 %v698, 3
    %v703 = vand.u32 %v702, 3
    %vm704 = vcmp.lt.s32.totalorder %v703, 2
    %vm705 = vcmp.eq.s32.totalorder %v703, 0
    %v706 = vxor.u32 %v700, 2147483648
    %v707 = vsel %vm705, %v699, %v706
    %vm708 = vcmp.eq.s32.totalorder %v703, 2
    %v709 = vxor.u32 %v699, 2147483648
    %v710 = vsel %vm708, %v709, %v700
    %v711 = vsel %vm704, %v707, %v710
    %v712 = vsel %vm701, nan, %v711
    %714 = vrot.lane.b32.xlu0 %v712, 64
    %v715 = vpop.permute.xlu0 %714
    %v717 = vmul.f32 %v495, %v715
    %v718 = vmul.f32 %v497, 0.5
    %v719 = vtanh.pop %v718
    %v720 = vadd.f32 %v719, 1.0
    %v721 = vmul.f32 %v720, 0.5
    %vm722 = vcmask 7168
    %v723 = vsel %vm722, %v721, 0.0
    %724 = vadd.xlane.f32.xlu0 %v723
    %v725 = vpop.xlane.xlu0 %724
    %v726 = vrot.slane %v725, 4
    %v727 = vadd.f32 %v725, %v726
    %v728 = vrot.slane %v727, 2
    %v729 = vadd.f32 %v727, %v728
    %v730 = vrot.slane %v729, 1
    %v731 = vadd.f32 %v729, %v730
    %s732 = vtos %v731
    %v733 = vrcp.pop 8.0
    %s734 = vtos %v733
    %s735 = smul.f32 %s732, %s734
    %v736 = vand.u32 2147483647, %v495
    %v737 = vld [vmem:[%s7] sm:$0x1]
    %v739 = vlaneseq
    %v740 = vshrl.u32 %v739, 7
    %v741 = vsub.s32 0, %v740
    %v742 = vrot.slane %v737, %v741
    %vm744 = vcmp.gt.f32.partialorder %v736, %v742
    %v745 = vsel %vm744, 1, 0
    %v746 = vcvt.s32.f32 %v745
    %vm747 = vcmask 523264
    %v748 = vsel %vm747, %v746, 0.0
    %749 = vadd.xlane.f32.xlu0 %v748
    %v750 = vpop.xlane.xlu0 %749
    %v751 = vrot.slane %v750, 4
    %v752 = vadd.f32 %v750, %v751
    %v753 = vrot.slane %v752, 2
    %v754 = vadd.f32 %v752, %v753
    %v755 = vrot.slane %v754, 1
    %v756 = vadd.f32 %v754, %v755
    %s757 = vtos %v756
    %v758 = vrcp.pop 512.0
    %s759 = vtos %v758
    %s760 = smul.f32 %s757, %s759
    %v761 = vmul.f32 %v737, 0.99
    %s762 = smul.f32 %s760, 0.01
    %v763 = vstv %s762
    %v764 = vadd.f32 %v761, %v763
    %v765 = vstv %s735
    %v766 = vstv %s760
    %v767 = vsel %vm722, %v765, %v766
    %vm768 = vcmask 15360
    %v769 = vsel %vm768, %v767, 0.0
    %v771 = vlaneseq
    %v772 = vshrl.u32 %v771, 7
    %v773 = vsub.s32 0, %v772
    %v774 = vrot.slane %v764, %v773
    %775 = vrot.lane.b32.xlu0 %v774, 64
    %v776 = vpop.permute.xlu0 %775
    %v778 = vsel %vm747, %v769, %v776
    %779 = vst [vmem:[#allocation14] sm:$0x1] %v778
    %781 = vrot.lane.b32.xlu0 %v717, 64
    %v782 = vpop.permute.xlu0 %781
    %v784 = vsel %vm747, %v608, %v782
    %v785 = vpack.c.bf16 %v784, %v784
    %v786 = vld [vmem:[#allocation8] sm:$0xf]
    %v787 = vld [vmem:[#allocation8 + $0x4] sm:$0xf]
    %v788 = vld [vmem:[#allocation8 + $0x8] sm:$0xf]
    %v789 = vld [vmem:[#allocation8 + $0xc] sm:$0xf]
    %v790 = vld [vmem:[#allocation8 + $0x10] sm:$0xf]
    %v791 = vld [vmem:[#allocation8 + $0x14] sm:$0xf]
    %v792 = vld [vmem:[#allocation8 + $0x18] sm:$0xf]
    %v793 = vld [vmem:[#allocation8 + $0x1c] sm:$0xf]
    %v794 = vld [vmem:[#allocation8 + $0x20] sm:$0xf]
    %v795 = vld [vmem:[#allocation8 + $0x24] sm:$0xf]
    %v796 = vld [vmem:[#allocation8 + $0x28] sm:$0xf]
    %v797 = vld [vmem:[#allocation8 + $0x2c] sm:$0xf]
    %v798 = vld [vmem:[#allocation8 + $0x30] sm:$0xf]
    %v799 = vld [vmem:[#allocation8 + $0x34] sm:$0xf]
    %v800 = vld [vmem:[#allocation8 + $0x38] sm:$0xf]
    %v801 = vld [vmem:[#allocation8 + $0x3c] sm:$0xf]
    %v818 = vunpack.c.l.b16 %v786
    %v819 = vunpack.c.l.b16 %v787
    %v820 = vunpack.c.l.b16 %v788
    %v821 = vunpack.c.l.b16 %v789
    %v822 = vunpack.c.l.b16 %v790
    %v823 = vunpack.c.l.b16 %v791
    %v824 = vunpack.c.l.b16 %v792
    %v825 = vunpack.c.l.b16 %v793
    %v826 = vunpack.c.l.b16 %v794
    %v827 = vunpack.c.l.b16 %v795
    %v828 = vunpack.c.l.b16 %v796
    %v829 = vunpack.c.l.b16 %v797
    %v830 = vunpack.c.l.b16 %v798
    %v831 = vunpack.c.l.b16 %v799
    %v832 = vunpack.c.l.b16 %v800
    %v833 = vunpack.c.l.b16 %v801
    %v834 = vpack.c.b16 %v819, %v818
    %v835 = vpack.c.b16 %v821, %v820
    %v836 = vpack.c.b16 %v823, %v822
    %v837 = vpack.c.b16 %v825, %v824
    %v838 = vpack.c.b16 %v827, %v826
    %v839 = vpack.c.b16 %v829, %v828
    %v840 = vpack.c.b16 %v831, %v830
    %v841 = vpack.c.b16 %v833, %v832
    %850 = vmatprep.subr.bf16.mxu0 0
    %851 = vmatpush1.bf16.msra.mxu0 %v834
    %852 = vmatprep.subr.bf16.mxu0 0
    %853 = vmatpush1.bf16.msra.mxu0 %v835
    %854 = vmatprep.subr.bf16.mxu0 0
    %855 = vmatpush1.bf16.msra.mxu0 %v836
    %856 = vmatprep.subr.bf16.mxu0 0
    %857 = vmatpush1.bf16.msra.mxu0 %v837
    %858 = vmatprep.subr.bf16.mxu0 0
    %859 = vmatpush1.bf16.msra.mxu0 %v838
    %860 = vmatprep.subr.bf16.mxu0 0
    %861 = vmatpush1.bf16.msra.mxu0 %v839
    %862 = vmatprep.subr.bf16.mxu0 0
    %863 = vmatpush1.bf16.msra.mxu0 %v840
    %864 = vmatprep.subr.bf16.mxu0 0
    %865 = vmatpush1.bf16.msra.mxu0 %v841
    %866 = vmatprep.subr.bf16.mxu0 0
    %867 = vmatpush1.bf16.msra.mxu0 0
    %868 = vmatprep.subr.bf16.mxu0 0
    %869 = vmatpush1.bf16.msra.mxu0 0
    %870 = vmatprep.subr.bf16.mxu0 0
    %871 = vmatpush1.bf16.msra.mxu0 0
    %872 = vmatprep.subr.bf16.mxu0 0
    %873 = vmatpush1.bf16.msra.mxu0 0
    %874 = vmatprep.subr.bf16.mxu0 0
    %875 = vmatpush1.bf16.msra.mxu0 0
    %876 = vmatprep.subr.bf16.mxu0 0
    %877 = vmatpush1.bf16.msra.mxu0 0
    %878 = vmatprep.subr.bf16.mxu0 0
    %879 = vmatpush1.bf16.msra.mxu0 0
    %880 = vmatprep.subr.bf16.mxu0 0
    %881 = vmatpush1.bf16.msra.mxu0 0
    %882 = vmatprep.mubr.bf16.mxu0 0
    %883 = vmatmul.mubr.bf16.gmra.mrb[0].mxu0 %v785
    %v884 = vpop.f32.mrb[0].mxu0
    %v885 = vadd.f32 0.0, %v884
    %v886 = vpop.f32.mrb[0].mxu0
    %v887 = vpop.f32.mrb[0].mxu0
    %v888 = vpop.f32.mrb[0].mxu0
    %889 = vdwg.mxu0
    %890 = vst [vmem:[#allocation11] sm:$0xff] %v885
    %v891 = vld [vmem:[#allocation10] sm:$0xff]
    %v892 = vld [vmem:[#allocation10 + $0x8] sm:$0xff]
    %v893 = vld [vmem:[#allocation10 + $0x10] sm:$0xff]
    %v894 = vld [vmem:[#allocation10 + $0x18] sm:$0xff]
    %v895 = vld [vmem:[#allocation10 + $0x20] sm:$0xff]
    %v896 = vld [vmem:[#allocation10 + $0x28] sm:$0xff]
    %v897 = vld [vmem:[#allocation10 + $0x30] sm:$0xff]
    %v898 = vld [vmem:[#allocation10 + $0x38] sm:$0xff]
    %v899 = vmul.f32 %v891, %v891
    %v900 = vmul.f32 %v892, %v892
    %v901 = vmul.f32 %v893, %v893
    %v902 = vmul.f32 %v894, %v894
    %v903 = vmul.f32 %v895, %v895
    %v904 = vmul.f32 %v896, %v896
    %v905 = vmul.f32 %v897, %v897
    %v906 = vmul.f32 %v898, %v898
    %907 = vrot.lane.b32.xlu0 %v899, 64
    %v908 = vpop.permute.xlu0 %907
    %909 = vrot.lane.b32.xlu0 %v900, 64
    %v910 = vpop.permute.xlu0 %909
    %911 = vrot.lane.b32.xlu0 %v901, 64
    %v912 = vpop.permute.xlu0 %911
    %913 = vrot.lane.b32.xlu0 %v902, 64
    %v914 = vpop.permute.xlu0 %913
    %915 = vrot.lane.b32.xlu0 %v903, 64
    %v916 = vpop.permute.xlu0 %915
    %917 = vrot.lane.b32.xlu0 %v904, 64
    %v918 = vpop.permute.xlu0 %917
    %919 = vrot.lane.b32.xlu0 %v905, 64
    %v920 = vpop.permute.xlu0 %919
    %921 = vrot.lane.b32.xlu0 %v906, 64
    %v922 = vpop.permute.xlu0 %921
    %v923 = vadd.f32 %v899, %v908
    %v924 = vadd.f32 %v900, %v910
    %v925 = vadd.f32 %v901, %v912
    %v926 = vadd.f32 %v902, %v914
    %v927 = vadd.f32 %v903, %v916
    %v928 = vadd.f32 %v904, %v918
    %v929 = vadd.f32 %v905, %v920
    %v930 = vadd.f32 %v906, %v922
    %v931 = vmax.f32 %v923, %v927
    %v932 = vmax.f32 %v924, %v928
    %v933 = vmax.f32 %v925, %v929
    %v934 = vmax.f32 %v926, %v930
    %v935 = vmax.f32 %v931, %v932
    %v936 = vmax.f32 %v933, %v934
    %v937 = vmax.f32 %v935, %v936
    %938 = vmax.xlane.f32.xlu0 %v937
    %v939 = vpop.xlane.xlu0 %938
    %v940 = vrot.slane %v939, 4
    %v941 = vmax.f32 %v939, %v940
    %v942 = vrot.slane %v941, 2
    %v943 = vmax.f32 %v941, %v942
    %v944 = vrot.slane %v943, 1
    %v945 = vmax.f32 %v943, %v944
    %s946 = vtos %v945
    %v947 = vstv %s946
    %v948 = vrsqrt.pop %v947
    %v949 = vmul.f32 %v947, %v948
    %vm950 = vcmp.eq.f32.partialorder %v947, inf
    %v951 = vsel %vm950, %v947, %v949
    %vm952 = vcmp.eq.f32.partialorder %v947, 0.0
    %v953 = vand.u32 %v947, 2147483648
    %v954 = vsel %vm952, %v953, %v951
    %s955 = vtos %v954
    %s956 = sadd.f32 %s955, 1e-08
    %s957 = smul.f32 %s956, %s956
    %v958 = vstv %s957
    %v959 = vrcp.pop %v958
    %s960 = vtos %v959
    %961 = vmatprep.subr.bf16.mxu0 0
    %962 = vmatpush1.bf16.xpose.msra.mxu0 %v834
    %963 = vmatprep.subr.bf16.mxu0 0
    %964 = vmatpush1.bf16.xpose.msra.mxu0 %v835
    %965 = vmatprep.subr.bf16.mxu0 0
    %966 = vmatpush1.bf16.xpose.msra.mxu0 %v836
    %967 = vmatprep.subr.bf16.mxu0 0
    %968 = vmatpush1.bf16.xpose.msra.mxu0 %v837
    %969 = vmatprep.subr.bf16.mxu0 0
    %970 = vmatpush1.bf16.xpose.msra.mxu0 %v838
    %971 = vmatprep.subr.bf16.mxu0 0
    %972 = vmatpush1.bf16.xpose.msra.mxu0 %v839
    %973 = vmatprep.subr.bf16.mxu0 0
    %974 = vmatpush1.bf16.xpose.msra.mxu0 %v840
    %975 = vmatprep.subr.bf16.mxu0 0
    %976 = vmatpush1.bf16.xpose.msra.mxu0 %v841
    %977 = vmatprep.subr.bf16.mxu0 0
    %978 = vmatpush1.bf16.xpose.msra.mxu0 0
    %979 = vmatprep.subr.bf16.mxu0 0
    %980 = vmatpush1.bf16.xpose.msra.mxu0 0
    %981 = vmatprep.subr.bf16.mxu0 0
    %982 = vmatpush1.bf16.xpose.msra.mxu0 0
    %983 = vmatprep.subr.bf16.mxu0 0
    %984 = vmatpush1.bf16.xpose.msra.mxu0 0
    %985 = vmatprep.subr.bf16.mxu0 0
    %986 = vmatpush1.bf16.xpose.msra.mxu0 0
    %987 = vmatprep.subr.bf16.mxu0 0
    %988 = vmatpush1.bf16.xpose.msra.mxu0 0
    %989 = vmatprep.subr.bf16.mxu0 0
    %990 = vmatpush1.bf16.xpose.msra.mxu0 0
    %991 = vmatprep.subr.bf16.mxu0 0
    %992 = vmatpush1.bf16.xpose.msra.mxu0 0
    %993 = vmatprep.mubr.bf16.mxu0 0
    %994 = vmatmul.mubr.bf16.gmra.mrb[0].mxu0 %v834
    %v995 = vpop.f32.mrb[0].mxu0
    %v996 = vadd.f32 0.0, %v995
    %v997 = vpop.f32.mrb[0].mxu0
    %v998 = vpop.f32.mrb[0].mxu0
    %v999 = vadd.f32 0.0, %v998
    %v1000 = vpop.f32.mrb[0].mxu0
    %1001 = vmatprep.mubr.bf16.mxu0 0
    %1002 = vmatmul.mubr.bf16.gmra.mrb[0].mxu0 %v835
    %v1003 = vpop.f32.mrb[0].mxu0
    %v1004 = vadd.f32 0.0, %v1003
    %v1005 = vpop.f32.mrb[0].mxu0
    %v1006 = vpop.f32.mrb[0].mxu0
    %v1007 = vadd.f32 0.0, %v1006
    %v1008 = vpop.f32.mrb[0].mxu0
    %1009 = vmatprep.mubr.bf16.mxu0 0
    %1010 = vmatmul.mubr.bf16.gmra.mrb[0].mxu0 %v836
    %v1011 = vpop.f32.mrb[0].mxu0
    %v1012 = vadd.f32 0.0, %v1011
    %v1013 = vpop.f32.mrb[0].mxu0
    %v1014 = vpop.f32.mrb[0].mxu0
    %v1015 = vadd.f32 0.0, %v1014
    %v1016 = vpop.f32.mrb[0].mxu0
    %1017 = vmatprep.mubr.bf16.mxu0 0
    %1018 = vmatmul.mubr.bf16.gmra.mrb[0].mxu0 %v837
    %v1019 = vpop.f32.mrb[0].mxu0
    %v1020 = vadd.f32 0.0, %v1019
    %v1021 = vpop.f32.mrb[0].mxu0
    %v1022 = vpop.f32.mrb[0].mxu0
    %v1023 = vadd.f32 0.0, %v1022
    %v1024 = vpop.f32.mrb[0].mxu0
    %1025 = vdwg.mxu0
    %v1026 = vstv %s960
    %v1027 = vmul.f32 %v996, %v1026
    %v1028 = vmul.f32 %v999, %v1026
    %v1029 = vmul.f32 %v1004, %v1026
    %v1030 = vmul.f32 %v1007, %v1026
    %v1031 = vmul.f32 %v1012, %v1026
    %v1032 = vmul.f32 %v1015, %v1026
    %v1033 = vmul.f32 %v1020, %v1026
    %v1034 = vmul.f32 %v1023, %v1026
    %1035 = vst [vmem:[#allocation12] sm:$0xff] %v1027
    %1036 = vst [vmem:[#allocation12 + $0x8] sm:$0xff] %v1028
    %1037 = vst [vmem:[#allocation12 + $0x10] sm:$0xff] %v1029
    %1038 = vst [vmem:[#allocation12 + $0x18] sm:$0xff] %v1030
    %1039 = vst [vmem:[#allocation12 + $0x20] sm:$0xff] %v1031
    %1040 = vst [vmem:[#allocation12 + $0x28] sm:$0xff] %v1032
    %1041 = vst [vmem:[#allocation12 + $0x30] sm:$0xff] %v1033
    %1042 = vst [vmem:[#allocation12 + $0x38] sm:$0xff] %v1034
    // Predicated region
    $region54: #{tpu_custom_call.1} parent=1 // pred_check
      _
    $region55: #{tpu_custom_call.1} parent=1 // pred_check_branch
      %1044 = sbr.rel (0) target = $region57
    $region56: #{tpu_custom_call.1} parent=1 // pred_region
      %s1046 = ssub.s32 128, 128
      %1047 = vsyncadd [#allocation4], %s1046
      %s1049 = sshll.u32 [#allocation11], 4
      %s1050 = int_to_ptr.vmem [resolvable:$true] %s1049
      %1052 = dma.vmem_to_hbm [thread:$0]  %s1050, 128, %s8, [#allocation4]
    $region57: #{tpu_custom_call.1} parent=1 // pred_fallthru
      _
    // Predicated region
    $region58: #{tpu_custom_call.1} parent=1 // pred_check
      _
    $region59: #{tpu_custom_call.1} parent=1 // pred_check_branch
      %1054 = sbr.rel (0) target = $region61
    $region60: #{tpu_custom_call.1} parent=1 // pred_region
      %s1056 = ssub.s32 1024, 1024
      %1057 = vsyncadd [#allocation13], %s1056
      %s1058 = sshll.u32 [#allocation12], 4
      %s1059 = int_to_ptr.vmem [resolvable:$true] %s1058
      %1064 = dma.vmem_to_hbm [thread:$0]  %s1059, 1024, %s9, [#allocation13], 128, 128, 8
    $region61: #{tpu_custom_call.1} parent=1 // pred_fallthru
      _
    // Predicated region
    $region62: #{tpu_custom_call.1} parent=1 // pred_check
      _
    $region63: #{tpu_custom_call.1} parent=1 // pred_check_branch
      %1066 = sbr.rel (0) target = $region65
    $region64: #{tpu_custom_call.1} parent=1 // pred_region
      %s1068 = ssub.s32 16, 16
      %1069 = vsyncadd [#allocation13], %s1068
      %s1071 = sshll.u32 [#allocation14], 4
      %s1072 = int_to_ptr.vmem [resolvable:$true] %s1071
      %1074 = dma.vmem_to_hbm [thread:$0]  %s1072, 16, %s10, [#allocation13]
    $region65: #{tpu_custom_call.1} parent=1 // pred_fallthru
      _
    // Predicated region
    $region66: #{tpu_custom_call.1} parent=1 // pred_check
      _
    $region67: #{tpu_custom_call.1} parent=1 // pred_check_branch
      %1076 = sbr.rel (0) target = $region69
    $region68: #{tpu_custom_call.1} parent=1 // pred_region
      %1077 = dma.done [#allocation4], 128
    $region69: #{tpu_custom_call.1} parent=1 // pred_fallthru
      _
    // Predicated region
    $region70: #{tpu_custom_call.1} parent=1 // pred_check
      _
    $region71: #{tpu_custom_call.1} parent=1 // pred_check_branch
      %1079 = sbr.rel (0) target = $region73
    $region72: #{tpu_custom_call.1} parent=1 // pred_region
      %1080 = dma.done [#allocation13], 1024
    $region73: #{tpu_custom_call.1} parent=1 // pred_fallthru
      _
    // Predicated region
    $region74: #{tpu_custom_call.1} parent=1 // pred_check
      _
    $region75: #{tpu_custom_call.1} parent=1 // pred_check_branch
      %1082 = sbr.rel (0) target = $region77
    $region76: #{tpu_custom_call.1} parent=1 // pred_region
      %1083 = dma.done [#allocation13], 16
    $region77: #{tpu_custom_call.1} parent=1 // pred_fallthru
      _
    %1084 = vsyncpa [#allocation3], 1
    %1085 = vsyncpa [#allocation6], 1
    %1086 = vsyncpa [#allocation9], 1
    %1087 = vsyncpa [#allocation4], 1
    %1088 = vsyncpa [#allocation13], 1

</llo_original>
